<compile_context>
chip_gen: v7x
topology: tpu7x:2x2x1
jax: 0.10.0
libtpu: 0.0.40
codegen_flags: <defaults>
</compile_context>

<pallas_src>
import math

import jax
import jax.numpy as jnp
from jax.experimental import pallas as pl
from jax.experimental.pallas import tpu as pltpu


def _lora_kernel(x_ref, a_ref, b_ref, o_ref):
    # x_ref: [TM, in_feature]
    # a_ref: [in_feature, r_pad]   (pre-transposed A, grid-invariant)
    # b_ref: [r_pad, TN]           (pre-transposed B, scaling folded in)
    h = jnp.dot(x_ref[...], a_ref[...], preferred_element_type=jnp.float32)
    y = jnp.dot(h.astype(b_ref.dtype), b_ref[...],
                preferred_element_type=jnp.float32)
    o_ref[...] = y.astype(o_ref.dtype)


def _round_up(x, n):
    return ((x + n - 1) // n) * n


def _sublane_mult(dtype):
    # Native sublane packing: 8 rows per vreg for 32-bit, 16 for bf16, 32 for i8.
    return 8 * max(1, 4 // jnp.dtype(dtype).itemsize)


def _vmem_capacity_bytes():
    try:
        cap = getattr(pltpu.get_tpu_info(), "vmem_capacity_bytes", None)
        if cap:
            return int(cap)
    except Exception:
        pass
    return 64 << 20  # conservative fallback (v7x per-TensorCore VMEM)


def prepare_lora_weights(w_a, w_b, scaling, x_dtype=jnp.float32):
    """One-time layout work — cache the result, do NOT redo per forward call.

    w_a: [r, in_feature], w_b: [out_feature, r]
    Returns (w_a_t [in, r_pad], w_b_t [r_pad, out_pad]) with `scaling` folded
    into w_b_t; zero padding is a numeric no-op.
    """
    r, in_feature = w_a.shape
    out_feature = w_b.shape[0]
    r_pad = _round_up(r, max(_sublane_mult(x_dtype), _sublane_mult(w_b.dtype)))
    out_pad = _round_up(out_feature, 128)

    w_a_t = jnp.zeros((in_feature, r_pad), dtype=w_a.dtype)
    w_a_t = w_a_t.at[:, :r].set(w_a.T)
    w_b_scaled = (w_b.astype(jnp.float32) * jnp.float32(scaling)).astype(w_b.dtype)
    w_b_t = jnp.zeros((r_pad, out_pad), dtype=w_b.dtype)
    w_b_t = w_b_t.at[:r, :out_feature].set(w_b_scaled.T)
    return w_a_t, w_b_t


def _plan_tiles(m, in_feature, out_pad, r_pad, x_dtype, w_dtype):
    """Pick (tm, tn, vmem_limit_bytes) from a full VMEM footprint model."""
    x_is = jnp.dtype(x_dtype).itemsize
    w_is = jnp.dtype(w_dtype).itemsize
    row_mult = _sublane_mult(x_dtype)

    cap = _vmem_capacity_bytes()
    # Leave headroom for compiler scratch: ~40 MiB class budget on v7x
    # (64 MiB/TC), up to 80 MiB on v5e/v6e (128 MiB physical).
    budget = min(int(cap * 0.65), 80 << 20)

    # N tile bounds the f32 [TM, TN] temporary for very wide out_feature.
    tn = min(out_pad, 2048)

    a_lanes = max(r_pad, 128)                     # A_t lane-pads to 128 lanes in VMEM
    a_bytes = in_feature * a_lanes * w_is         # Buffered(1): single copy
    b_bufs = 1 if tn == out_pad else 2
    b_bytes = b_bufs * max(r_pad, 8) * tn * w_is
    fixed = a_bytes + b_bytes

    per_row = (2 * in_feature * x_is              # double-buffered x tile
               + 2 * tn * x_is                    # double-buffered y tile
               + tn * 4                           # f32 dot temporary
               + tn * x_is                        # cast-to-output temporary
               + a_lanes * 4)                     # f32 h temporary (lane padded)

    avail = max(budget - fixed, 1 << 20)
    tm = max(row_mult, (avail // per_row) // row_mult * row_mult)
    tm = min(tm, 2048)
    tm = min(tm, _round_up(m, row_mult))
    # Ensure >= 2 M tiles when possible so both TensorCores get work (v7x).
    if m >= 2 * row_mult:
        tm = min(tm, _round_up(-(-m // 2), row_mult))

    footprint = fixed + tm * per_row
    vmem_limit = int(max(32 << 20, min(footprint + (16 << 20), cap - (4 << 20))))
    return tm, tn, vmem_limit


def linear_lora_forward_prepared(x, w_a_t, w_b_t, out_feature):
    """x: [..., in_feature] -> [..., out_feature], using pre-laid-out weights."""
    in_feature = x.shape[-1]
    r_pad = w_a_t.shape[1]
    out_pad = w_b_t.shape[1]
    lead = x.shape[:-1]
    m = 1
    for d in lead:
        m *= d
    m = max(m, 1)
    x2d = x.reshape(m, in_feature)

    tm, tn, vmem_limit = _plan_tiles(m, in_feature, out_pad, r_pad,
                                     x2d.dtype, w_b_t.dtype)
    grid = (pl.cdiv(m, tm), pl.cdiv(out_pad, tn))

    x_is = x2d.dtype.itemsize
    w_is = jnp.dtype(w_b_t.dtype).itemsize
    cost = pl.CostEstimate(
        flops=2 * m * r_pad * (in_feature + out_pad),
        transcendentals=0,
        bytes_accessed=(m * in_feature * x_is + m * out_pad * x_is
                        + (in_feature * r_pad + r_pad * out_pad) * w_is),
    )

    b_spec_kwargs = {}
    if grid[1] == 1:
        # B is grid-invariant too -> single resident VMEM copy.
        b_spec_kwargs["pipeline_mode"] = pl.Buffered(1)

    out = pl.pallas_call(
        _lora_kernel,
        out_shape=jax.ShapeDtypeStruct((m, out_pad), x.dtype),
        grid_spec=pl.GridSpec(
            grid=grid,
            in_specs=[
                # x tile marches along M, resident across the inner N axis.
                pl.BlockSpec((tm, in_feature), lambda i, j: (i, 0)),
                # Grid-invariant A: single VMEM copy, DMA'd once.
                pl.BlockSpec((in_feature, r_pad), lambda i, j: (0, 0),
                             pipeline_mode=pl.Buffered(1)),
                # B tile along N (invariant when out fits in one tile).
                pl.BlockSpec((r_pad, tn), lambda i, j: (0, j), **b_spec_kwargs),
            ],
            out_specs=pl.BlockSpec((tm, tn), lambda i, j: (i, j)),
        ),
        compiler_params=pltpu.CompilerParams(
            dimension_semantics=("parallel", "arbitrary"),
            vmem_limit_bytes=vmem_limit,
        ),
        cost_estimate=cost,
    )(x2d, w_a_t, w_b_t)

    if out_pad != out_feature:
        out = out[:, :out_feature]
    return out.reshape(*lead, out_feature)


def linear_lora_forward(x, w_a, w_b, scaling):
    """Convenience wrapper. For repeated calls, run prepare_lora_weights()
    once (cache it) and call linear_lora_forward_prepared() directly."""
    w_a_t, w_b_t = prepare_lora_weights(w_a, w_b, scaling, x.dtype)
    return linear_lora_forward_prepared(x, w_a_t, w_b_t, w_b.shape[0])


def init_params(key, r, in_feature, out_feature):
    """Deterministic init matching the PyTorch module's initialize()."""
    # kaiming_uniform_(a=sqrt(5)) on weight [r, in_feature]:
    #   bound = sqrt(6 / ((1 + a^2) * fan_in)) = 1 / sqrt(fan_in)
    bound = 1.0 / math.sqrt(float(in_feature))
    w_a = jax.random.uniform(
        key, (r, in_feature), dtype=jnp.float32, minval=-bound, maxval=bound
    )
    w_b = jnp.zeros((out_feature, r), dtype=jnp.float32)  # lora_B zero-init
    return w_a, w_b


if __name__ == "__main__":
    # Module hyperparameters (small, consistent with a Linear LoRA adapter)
    r = 4
    in_feature = 32
    out_feature = 32
    lora_alpha = 8
    scaling = lora_alpha / r
    # TODO(synk): lora_dropout > 0 (training-time dropout) is not implemented;
    # the default p=0.0 makes it an identity at inference.

    key = jax.random.PRNGKey(0)
    k_x, k_a = jax.random.split(key)

    # x: [batch, seq, in_feature]
    batch, seq = 2, 8
    x = jax.random.normal(k_x, (batch, seq, in_feature), dtype=jnp.float32)

    w_a, w_b = init_params(k_a, r, in_feature, out_feature)
    # Non-zero B as well so the second matmul is exercised numerically
    # (the true module init gives all-zeros output).
    w_b_test = jax.random.normal(jax.random.PRNGKey(1), (out_feature, r),
                                 dtype=jnp.float32) * 0.02

    # One-time weight prep (hoisted out of the forward path).
    wa_zero_t, wb_zero_t = prepare_lora_weights(w_a, w_b, scaling, x.dtype)
    wa_t, wb_t = prepare_lora_weights(w_a, w_b_test, scaling, x.dtype)

    y_zero = linear_lora_forward_prepared(x, wa_zero_t, wb_zero_t, out_feature)
    y = linear_lora_forward_prepared(x, wa_t, wb_t, out_feature)
    jax.block_until_ready((y_zero, y))

    # Reference in plain JAX
    ref = (x.reshape(-1, in_feature) @ w_a.T @ w_b_test.T * scaling).reshape(
        batch, seq, out_feature
    )
    assert jnp.allclose(y_zero, 0.0), "zero-init B should give zero output"
    assert jnp.allclose(y, ref, atol=1e-5, rtol=1e-5), "mismatch vs reference"

    print("KERNEL_OK")
</pallas_src>

<mosaic_0001>
module attributes {stable_mosaic.version = 11 : i64} {
  func.func @_lora_kernel(%arg0: i32, %arg1: i32, %arg2: memref<8x32xf32, #tpu.memory_space<vmem>>, %arg3: memref<32x8xf32, #tpu.memory_space<vmem>>, %arg4: memref<8x128xf32, #tpu.memory_space<vmem>>, %arg5: memref<8x128xf32, #tpu.memory_space<vmem>>) attributes {dimension_semantics = [#tpu.dimension_semantics<parallel>, #tpu.dimension_semantics<arbitrary>], iteration_bounds = array<i64: 2, 1>, scalar_prefetch = 0 : i64, scratch_operands = 0 : i64, tpu.core_type = #tpu.core_type<tc>, window_params = [{transform_indices = @transform_0, window_bounds = array<i64: 8, 32>}, {pipeline_mode = #tpu.pipeline_mode<synchronous>, transform_indices = @transform_1, window_bounds = array<i64: 32, 8>}, {pipeline_mode = #tpu.pipeline_mode<synchronous>, transform_indices = @transform_2, window_bounds = array<i64: 8, 128>}, {transform_indices = @transform_3, window_bounds = array<i64: 8, 128>}]} {
    %c0 = arith.constant 0 : index
    %c0_0 = arith.constant 0 : index
    %0 = vector.load %arg2[%c0, %c0_0] : memref<8x32xf32, #tpu.memory_space<vmem>>, vector<8x32xf32>
    %c0_1 = arith.constant 0 : index
    %c0_2 = arith.constant 0 : index
    %1 = vector.load %arg3[%c0_1, %c0_2] : memref<32x8xf32, #tpu.memory_space<vmem>>, vector<32x8xf32>
    %cst = arith.constant dense<0.000000e+00> : vector<8x8xf32>
    %2 = tpu.matmul %0, %1, %cst {dimension_numbers = #tpu.dot_dimension_numbers<[1], [0], [0], [1], [0, 0, 1, 1], [], []>} : vector<8x32xf32>, vector<32x8xf32>, vector<8x8xf32> -> vector<8x8xf32>
    %c0_3 = arith.constant 0 : index
    %c0_4 = arith.constant 0 : index
    %3 = vector.load %arg4[%c0_3, %c0_4] : memref<8x128xf32, #tpu.memory_space<vmem>>, vector<8x128xf32>
    %cst_5 = arith.constant dense<0.000000e+00> : vector<8x128xf32>
    %4 = tpu.matmul %2, %3, %cst_5 {dimension_numbers = #tpu.dot_dimension_numbers<[1], [0], [0], [1], [0, 0, 1, 1], [], []>} : vector<8x8xf32>, vector<8x128xf32>, vector<8x128xf32> -> vector<8x128xf32>
    %c0_6 = arith.constant 0 : index
    %c0_7 = arith.constant 0 : index
    %5 = vector.load %arg5[%c0_6, %c0_7] : memref<8x128xf32, #tpu.memory_space<vmem>>, vector<8x128xf32>
    tpu.vector_store %arg5[%c0_6, %c0_7], %4 {strides = array<i32>} : memref<8x128xf32, #tpu.memory_space<vmem>>, vector<8x128xf32>,
    return
  }
  func.func @transform_0(%arg0: i32, %arg1: i32) -> (i32, i32) {
    %c0_i32 = arith.constant 0 : i32
    %c0_i32_0 = arith.constant 0 : i32
    return %arg0, %c0_i32 : i32, i32
  }
  func.func @transform_1(%arg0: i32, %arg1: i32) -> (i32, i32) {
    %c0_i32 = arith.constant 0 : i32
    %c0_i32_0 = arith.constant 0 : i32
    %c0_i32_1 = arith.constant 0 : i32
    return %c0_i32, %c0_i32_0 : i32, i32
  }
  func.func @transform_2(%arg0: i32, %arg1: i32) -> (i32, i32) {
    %c0_i32 = arith.constant 0 : i32
    %c0_i32_0 = arith.constant 0 : i32
    return %c0_i32, %arg1 : i32, i32
  }
  func.func @transform_3(%arg0: i32, %arg1: i32) -> (i32, i32) {
    %c0_i32 = arith.constant 0 : i32
    return %arg0, %arg1 : i32, i32
  }
}

</mosaic_0001>

<llo_original>
// kernel: tpu_custom_call.1
$region0: #{tpu_custom_call.1}
  #allocation0 [shape = 'u32[]', space=smem, size = 0x4, offset = 0x4, fixed_abs, tag = 'smem constant byte address 0x4 - core index']
  #allocation1 [shape = 'u32[144,128]{1,0:T(1,128)}', space=vmem, size = 0x12000, scoped, tag = 'internal scratch']
  %s0 = inlined_call_operand.vmem [shape: f32[16,32], index: 0, kind: input, shape index: {}]
  %s1 = inlined_call_operand.vmem [shape: f32[32,8], index: 1, kind: input, shape index: {}]
  %s2 = inlined_call_operand.vmem [shape: f32[8,128], index: 2, kind: input, shape index: {}]
  %s3 = inlined_call_operand.hbm [shape: f32[16,128], index: 3, kind: output, shape index: {}]
  %s4 = sld [smem:[#allocation0]]
  $region45: #{tpu_custom_call.1} parent=0
    _
  %s6 = ssub.s32 1, %s4
  %s7 = scalar_select 0, %s6, %s4
  $region1: #{tpu_custom_call.1} parent=0
    #allocation2 [shape = 'u8[8192]{0}', space=vmem, size = 0x2000, scoped, tag = 'output window, operand 0']
    #allocation3 [shape = 's32[2]{0}', space=sflag, size = 0x8, scoped, tag = 'scoped memory for tpu_custom_call.1']
    %8 = vsyncpa [#allocation3], 0
    %s9 = scalar_lea.sflag [#allocation3], 1
    %10 = vsyncpa %s9, 0
    loop: start=0, step=1, limit=4
    $region2: #{tpu_custom_call.1} parent=1 // loop_pre_header
      _
    $region3: #{tpu_custom_call.1} parent=1 // loop_header
      %s12 = sphi 0, %s16
      %p13 = scmp.ge.s32.totalorder %s12, 4
      %s19 = sphi 0, %s31
      %s20 = sphi 0, %s27
      %s21 = sphi 0, %s19
      %s22 = sphi 0, %s20
      %s23 = sphi 0, %s21
      %s24 = sphi 0, %s22
      %s34 = sphi 0, %s36
      %s37 = sphi 0, %s34
      %s38 = sphi 0, %s37
      %s54 = sphi 0, %s38
      %s58 = sphi 0, %s58
      %s60 = sphi 0, %s58
      %s61 = sphi 0, %s60
      %s75 = sphi 0, %s61
      %s81 = sphi 0, %s83
      %s84 = sphi 0, %s81
      %s85 = sphi 0, %s84
      %s101 = sphi 0, %s85
      %s109 = sphi 0, %s111
      %s112 = sphi 0, %s109
      %s113 = sphi 0, %s112
      %s129 = sphi 0, %s113
    $region4: #{tpu_custom_call.1} parent=1 // loop_header_branch
      %15 = sbr.rel (%p13) target = $region8
    $region5: #{tpu_custom_call.1} parent=1 // loop_body
      %s17 = ssub.s32 %s12, 1
      %s18 = ssub.s32 %s12, 2
      %s25 = sadd.s32 1, %s20
      %p26 = scmp.ge.s32.totalorder %s25, 1
      %s27 = scalar_select %p26, 0, %s25
      %s28 = sadd.s32 1, %s19
      %s29 = scalar_select %p26, %s28, %s19
      %p30 = scmp.ge.s32.totalorder %s29, 2
      %s31 = scalar_select %p30, 0, %s29
      %s32 = ssub.s32 %s19, %s31
      %p33 = scmp.eq.s32.totalorder %s32, 0
      %s35 = sadd.s32 %s34, 1
      %s36 = scalar_select %p33, %s34, %s35
      %p39 = pneg %p33
      %p40 = scmp.eq.s32.totalorder %s12, 1
      %p41 = por %p39, %p40
      %p42 = scmp.ne.s32.totalorder %s34, %s37
      %p43 = scmp.eq.s32.totalorder %s12, 0
      %p44 = por %p42, %p43
      %p45 = scmp.ne.s32.totalorder %s34, %s37
      %p46 = scmp.eq.s32.totalorder %s17, 1
      %p47 = por %p45, %p46
      %p48 = scmp.ne.s32.totalorder %s37, %s38
      %p49 = scmp.eq.s32.totalorder %s17, 0
      %p50 = por %p48, %p49
      %p51 = scmp.ne.s32.totalorder %s37, %s38
      %p52 = scmp.eq.s32.totalorder %s18, 1
      %p53 = por %p51, %p52
      %p55 = scmp.ne.s32.totalorder %s38, %s54
      %p56 = scmp.eq.s32.totalorder %s18, 0
      %p57 = por %p55, %p56
      %s59 = sadd.s32 %s58, 1
      %p62 = scmp.eq.s32.totalorder %s12, 1
      %p63 = scmp.ne.s32.totalorder %s58, %s60
      %p64 = scmp.eq.s32.totalorder %s12, 0
      %p65 = por %p63, %p64
      %p66 = scmp.ne.s32.totalorder %s58, %s60
      %p67 = scmp.eq.s32.totalorder %s17, 1
      %p68 = por %p66, %p67
      %p69 = scmp.ne.s32.totalorder %s60, %s61
      %p70 = scmp.eq.s32.totalorder %s17, 0
      %p71 = por %p69, %p70
      %p72 = scmp.ne.s32.totalorder %s60, %s61
      %p73 = scmp.eq.s32.totalorder %s18, 1
      %p74 = por %p72, %p73
      %p76 = scmp.ne.s32.totalorder %s61, %s75
      %p77 = scmp.eq.s32.totalorder %s18, 0
      %p78 = por %p76, %p77
      %s79 = ssub.s32 %s20, %s27
      %p80 = scmp.eq.s32.totalorder %s79, 0
      %s82 = sadd.s32 %s81, 1
      %s83 = scalar_select %p80, %s81, %s82
      %p86 = pneg %p80
      %p87 = scmp.eq.s32.totalorder %s12, 1
      %p88 = por %p86, %p87
      %p89 = scmp.ne.s32.totalorder %s81, %s84
      %p90 = scmp.eq.s32.totalorder %s12, 0
      %p91 = por %p89, %p90
      %p92 = scmp.ne.s32.totalorder %s81, %s84
      %p93 = scmp.eq.s32.totalorder %s17, 1
      %p94 = por %p92, %p93
      %p95 = scmp.ne.s32.totalorder %s84, %s85
      %p96 = scmp.eq.s32.totalorder %s17, 0
      %p97 = por %p95, %p96
      %p98 = scmp.ne.s32.totalorder %s84, %s85
      %p99 = scmp.eq.s32.totalorder %s18, 1
      %p100 = por %p98, %p99
      %p102 = scmp.ne.s32.totalorder %s85, %s101
      %p103 = scmp.eq.s32.totalorder %s18, 0
      %p104 = por %p102, %p103
      %s105 = ssub.s32 %s19, %s31
      %s106 = ssub.s32 %s20, %s27
      %s107 = sor.u32 %s105, %s106
      %p108 = scmp.eq.s32.totalorder %s107, 0
      %s110 = sadd.s32 %s109, 1
      %s111 = scalar_select %p108, %s109, %s110
      %p114 = pneg %p108
      %p115 = scmp.eq.s32.totalorder %s12, 1
      %p116 = por %p114, %p115
      %p117 = scmp.ne.s32.totalorder %s109, %s112
      %p118 = scmp.eq.s32.totalorder %s12, 0
      %p119 = por %p117, %p118
      %p120 = scmp.ne.s32.totalorder %s109, %s112
      %p121 = scmp.eq.s32.totalorder %s17, 1
      %p122 = por %p120, %p121
      %p123 = scmp.ne.s32.totalorder %s112, %s113
      %p124 = scmp.eq.s32.totalorder %s17, 0
      %p125 = por %p123, %p124
      %p126 = scmp.ne.s32.totalorder %s112, %s113
      %p127 = scmp.eq.s32.totalorder %s18, 1
      %p128 = por %p126, %p127
      %p130 = scmp.ne.s32.totalorder %s113, %s129
      %p131 = scmp.eq.s32.totalorder %s18, 0
      %p132 = por %p130, %p131
      %p133 = scmp.le.s32.totalorder 1, %s12
      %p134 = scmp.lt.s32.totalorder %s12, 3
      %p135 = pnand %p133, %p134
      %p136 = pneg %p135
      // Predicated region
      $region9: #{tpu_custom_call.1} parent=5 // pred_check
        _
      $region10: #{tpu_custom_call.1} parent=5 // pred_check_branch
        %138 = sbr.rel (%p135) target = $region12
      $region11: #{tpu_custom_call.1} parent=5 // pred_region
        %s139 = ssub.s32 %s12, 1
        // Predicated region
        $region13: #{tpu_custom_call.1} parent=11 // pred_check
          %p140 = pneg %p71
        $region14: #{tpu_custom_call.1} parent=11 // pred_check_branch
          %142 = sbr.rel (%p140) target = $region16
        $region15: #{tpu_custom_call.1} parent=11 // pred_region
          _
        $region16: #{tpu_custom_call.1} parent=11 // pred_fallthru
          _
        // Predicated region
        $region17: #{tpu_custom_call.1} parent=11 // pred_check
          %p143 = pneg %p97
        $region18: #{tpu_custom_call.1} parent=11 // pred_check_branch
          %145 = sbr.rel (%p143) target = $region20
        $region19: #{tpu_custom_call.1} parent=11 // pred_region
          %p146 = scmp.lt.s32.totalorder %s22, 0
          %s147 = scalar_select %p146, %s22, 0
          %s148 = smul.addr %s147, 8
          %s149 = scalar_lea.vmem %s2, %s148
        $region20: #{tpu_custom_call.1} parent=11 // pred_fallthru
          _
      $region12: #{tpu_custom_call.1} parent=5 // pred_fallthru
        _
      %p150 = scmp.lt.s32.totalorder %s12, 2
      // Predicated region
      $region21: #{tpu_custom_call.1} parent=5 // pred_check
        %p151 = pneg %p150
      $region22: #{tpu_custom_call.1} parent=5 // pred_check_branch
        %153 = sbr.rel (%p151) target = $region24
      $region23: #{tpu_custom_call.1} parent=5 // pred_region
        // Predicated region
        $region25: #{tpu_custom_call.1} parent=23 // pred_check
          %p154 = pneg %p44
        $region26: #{tpu_custom_call.1} parent=23 // pred_check_branch
          %156 = sbr.rel (%p154) target = $region28
        $region27: #{tpu_custom_call.1} parent=23 // pred_region
          %p157 = scmp.lt.s32.totalorder %s19, 1
          %s158 = scalar_select %p157, %s19, 1
          %s159 = smul.addr %s158, 8
          %s160 = scalar_lea.vmem %s0, %s159
        $region28: #{tpu_custom_call.1} parent=23 // pred_fallthru
          _
      $region24: #{tpu_custom_call.1} parent=5 // pred_fallthru
        _
      %p161 = scmp.le.s32.totalorder 1, %s12
      %p162 = scmp.lt.s32.totalorder %s12, 3
      %p163 = pnand %p161, %p162
      %p164 = pneg %p163
      // Predicated region
      $region29: #{tpu_custom_call.1} parent=5 // pred_check
        _
      $region30: #{tpu_custom_call.1} parent=5 // pred_check_branch
        %166 = sbr.rel (%p163) target = $region32
      $region31: #{tpu_custom_call.1} parent=5 // pred_region
        %s167 = ssub.s32 %s12, 1
        %p168 = scmp.lt.s32.totalorder %s21, 1
        %s169 = scalar_select %p168, %s21, 1
        %s170 = smul.addr %s169, 8
        %s171 = scalar_lea.vmem %s0, %s170
        %p172 = pneg %p50
        %p173 = pneg %p47
        %p174 = pneg %p71
        %p175 = pneg %p68
        %p176 = scmp.lt.s32.totalorder %s22, 0
        %s177 = scalar_select %p176, %s22, 0
        %s178 = smul.addr %s177, 8
        %s179 = scalar_lea.vmem %s2, %s178
        %p180 = pneg %p97
        %p181 = pneg %p94
        %p182 = pneg %p125
        %p183 = pneg %p122
        %s184 = sand.u32 %s112, 1
        %s185 = scalar_lea.sflag [#allocation3], %s184
        %s186 = sand.u32 %s112, 1
        %s187 = smul.addr %s186, 8
        %s188 = scalar_lea.vmem [#allocation2], %s187
        %p189 = scmp.lt.s32.totalorder %s21, 1
        %s190 = scalar_select %p189, %s21, 1
        %s191 = smul.addr %s190, 8
        %s192 = scalar_lea.vmem %s0, %s191
        %p193 = scmp.lt.s32.totalorder %s22, 0
        %s194 = scalar_select %p193, %s22, 0
        %s195 = smul.addr %s194, 8
        %s196 = scalar_lea.vmem %s2, %s195
        %v197 = vld [vmem:[%s192] sm:$0xff]
        %v198 = vld [vmem:[%s1] sm:$0xff]
        %v199 = vld [vmem:[%s1 + $0x8] sm:$0xff]
        %v200 = vld [vmem:[%s1 + $0x10] sm:$0xff]
        %v201 = vld [vmem:[%s1 + $0x18] sm:$0xff]
        %vm202 = vcmask 261120
        %v204 = vsel %vm202, %v197, 0
        %206 = vmatprep.subr.mxu0 0.0
        %207 = vmatpush1.msra.mxu0 %v198
        %208 = vmatprep.subr.mxu0 0.0
        %209 = vmatpush1.msra.mxu0 %v199
        %210 = vmatprep.subr.mxu0 0.0
        %211 = vmatpush1.msra.mxu0 %v200
        %212 = vmatprep.subr.mxu0 0.0
        %213 = vmatpush1.msra.mxu0 %v201
        %214 = vmatprep.subr.mxu0 0.0
        %215 = vmatpush1.msra.mxu0 0.0
        %216 = vmatprep.subr.mxu0 0.0
        %217 = vmatpush1.msra.mxu0 0.0
        %218 = vmatprep.subr.mxu0 0.0
        %219 = vmatpush1.msra.mxu0 0.0
        %220 = vmatprep.subr.mxu0 0.0
        %221 = vmatpush1.msra.mxu0 0.0
        %222 = vmatprep.subr.mxu0 0.0
        %223 = vmatpush1.msra.mxu0 0.0
        %224 = vmatprep.subr.mxu0 0.0
        %225 = vmatpush1.msra.mxu0 0.0
        %226 = vmatprep.subr.mxu0 0.0
        %227 = vmatpush1.msra.mxu0 0.0
        %228 = vmatprep.subr.mxu0 0.0
        %229 = vmatpush1.msra.mxu0 0.0
        %230 = vmatprep.subr.mxu0 0.0
        %231 = vmatpush1.msra.mxu0 0.0
        %232 = vmatprep.subr.mxu0 0.0
        %233 = vmatpush1.msra.mxu0 0.0
        %234 = vmatprep.subr.mxu0 0.0
        %235 = vmatpush1.msra.mxu0 0.0
        %236 = vmatprep.subr.mxu0 0.0
        %237 = vmatpush1.msra.mxu0 0.0
        %238 = vmatprep.subr.mxu0 0.0
        %239 = vmatpush1.msra.mxu0 0.0
        %240 = vmatprep.subr.mxu0 0.0
        %241 = vmatpush1.msra.mxu0 0.0
        %242 = vmatprep.subr.mxu0 0.0
        %243 = vmatpush1.msra.mxu0 0.0
        %244 = vmatprep.subr.mxu0 0.0
        %245 = vmatpush1.msra.mxu0 0.0
        %246 = vmatprep.subr.mxu0 0.0
        %247 = vmatpush1.msra.mxu0 0.0
        %248 = vmatprep.subr.mxu0 0.0
        %249 = vmatpush1.msra.mxu0 0.0
        %250 = vmatprep.subr.mxu0 0.0
        %251 = vmatpush1.msra.mxu0 0.0
        %252 = vmatprep.subr.mxu0 0.0
        %253 = vmatpush1.msra.mxu0 0.0
        %254 = vmatprep.subr.mxu0 0.0
        %255 = vmatpush1.msra.mxu0 0.0
        %256 = vmatprep.subr.mxu0 0.0
        %257 = vmatpush1.msra.mxu0 0.0
        %258 = vmatprep.subr.mxu0 0.0
        %259 = vmatpush1.msra.mxu0 0.0
        %260 = vmatprep.subr.mxu0 0.0
        %261 = vmatpush1.msra.mxu0 0.0
        %262 = vmatprep.subr.mxu0 0.0
        %263 = vmatpush1.msra.mxu0 0.0
        %264 = vmatprep.subr.mxu0 0.0
        %265 = vmatpush1.msra.mxu0 0.0
        %266 = vmatprep.subr.mxu0 0.0
        %267 = vmatpush1.msra.mxu0 0.0
        %268 = vmatprep.subr.mxu0 0.0
        %269 = vmatpush1.msra.mxu0 0.0
        %270 = vmatprep.mubr.f32.mxu0 0.0
        %271 = vmatmul.mubr.f32.gmra.mrb[0].mxu0 %v204
        %v272 = vpop.f32.mrb[0].mxu0
        %v273 = vadd.f32 0.0, %v272
        %v274 = vpop.f32.mrb[0].mxu0
        %275 = vdwg.mxu0
        %v276 = vld [vmem:[%s196] sm:$0xff]
        %vm277 = vcmask 64512
        %v279 = vsel %vm277, %v273, 0
        %281 = vmatprep.subr.mxu0 0.0
        %282 = vmatpush1.msra.mxu0 %v276
        %283 = vmatprep.subr.mxu0 0.0
        %284 = vmatpush1.msra.mxu0 0.0
        %285 = vmatprep.subr.mxu0 0.0
        %286 = vmatpush1.msra.mxu0 0.0
        %287 = vmatprep.subr.mxu0 0.0
        %288 = vmatpush1.msra.mxu0 0.0
        %289 = vmatprep.subr.mxu0 0.0
        %290 = vmatpush1.msra.mxu0 0.0
        %291 = vmatprep.subr.mxu0 0.0
        %292 = vmatpush1.msra.mxu0 0.0
        %293 = vmatprep.subr.mxu0 0.0
        %294 = vmatpush1.msra.mxu0 0.0
        %295 = vmatprep.subr.mxu0 0.0
        %296 = vmatpush1.msra.mxu0 0.0
        %297 = vmatprep.subr.mxu0 0.0
        %298 = vmatpush1.msra.mxu0 0.0
        %299 = vmatprep.subr.mxu0 0.0
        %300 = vmatpush1.msra.mxu0 0.0
        %301 = vmatprep.subr.mxu0 0.0
        %302 = vmatpush1.msra.mxu0 0.0
        %303 = vmatprep.subr.mxu0 0.0
        %304 = vmatpush1.msra.mxu0 0.0
        %305 = vmatprep.subr.mxu0 0.0
        %306 = vmatpush1.msra.mxu0 0.0
        %307 = vmatprep.subr.mxu0 0.0
        %308 = vmatpush1.msra.mxu0 0.0
        %309 = vmatprep.subr.mxu0 0.0
        %310 = vmatpush1.msra.mxu0 0.0
        %311 = vmatprep.subr.mxu0 0.0
        %312 = vmatpush1.msra.mxu0 0.0
        %313 = vmatprep.subr.mxu0 0.0
        %314 = vmatpush1.msra.mxu0 0.0
        %315 = vmatprep.subr.mxu0 0.0
        %316 = vmatpush1.msra.mxu0 0.0
        %317 = vmatprep.subr.mxu0 0.0
        %318 = vmatpush1.msra.mxu0 0.0
        %319 = vmatprep.subr.mxu0 0.0
        %320 = vmatpush1.msra.mxu0 0.0
        %321 = vmatprep.subr.mxu0 0.0
        %322 = vmatpush1.msra.mxu0 0.0
        %323 = vmatprep.subr.mxu0 0.0
        %324 = vmatpush1.msra.mxu0 0.0
        %325 = vmatprep.subr.mxu0 0.0
        %326 = vmatpush1.msra.mxu0 0.0
        %327 = vmatprep.subr.mxu0 0.0
        %328 = vmatpush1.msra.mxu0 0.0
        %329 = vmatprep.subr.mxu0 0.0
        %330 = vmatpush1.msra.mxu0 0.0
        %331 = vmatprep.subr.mxu0 0.0
        %332 = vmatpush1.msra.mxu0 0.0
        %333 = vmatprep.subr.mxu0 0.0
        %334 = vmatpush1.msra.mxu0 0.0
        %335 = vmatprep.subr.mxu0 0.0
        %336 = vmatpush1.msra.mxu0 0.0
        %337 = vmatprep.subr.mxu0 0.0
        %338 = vmatpush1.msra.mxu0 0.0
        %339 = vmatprep.subr.mxu0 0.0
        %340 = vmatpush1.msra.mxu0 0.0
        %341 = vmatprep.subr.mxu0 0.0
        %342 = vmatpush1.msra.mxu0 0.0
        %343 = vmatprep.subr.mxu0 0.0
        %344 = vmatpush1.msra.mxu0 0.0
        %345 = vmatprep.mubr.f32.mxu0 0.0
        %346 = vmatmul.mubr.f32.gmra.mrb[0].mxu0 %v279
        %v347 = vpop.f32.mrb[0].mxu0
        %v348 = vadd.f32 0.0, %v347
        %v349 = vpop.f32.mrb[0].mxu0
        %350 = vdwg.mxu0
        %351 = vst [vmem:[%s188] sm:$0xff] %v348
        %s352 = sand.u32 %s112, 1
        %s353 = scalar_lea.sflag [#allocation3], %s352
        %s354 = sand.u32 %s112, 1
        %s355 = smul.addr %s354, 8
        %s356 = scalar_lea.vmem [#allocation2], %s355
        // Predicated region
        $region33: #{tpu_custom_call.1} parent=31 // pred_check
          %p357 = pneg %p122
        $region34: #{tpu_custom_call.1} parent=31 // pred_check_branch
          %359 = sbr.rel (%p357) target = $region36
        $region35: #{tpu_custom_call.1} parent=31 // pred_region
          %s361 = ssub.s32 128, 128
          %362 = vsyncadd %s353, %s361
          %s363 = sadd.s32 %s22, %s21
          %s364 = smul.addr %s363, 128
          %s365 = scalar_lea.hbm %s3, %s364
          %s367 = sshll.u32 %s356, 4
          %s368 = int_to_ptr.vmem [resolvable:$true] %s367
          %370 = dma.vmem_to_hbm [thread:$0]  %s368, 128, %s365, %s353
        $region36: #{tpu_custom_call.1} parent=31 // pred_fallthru
          _
      $region32: #{tpu_custom_call.1} parent=5 // pred_fallthru
        _
      %p371 = scmp.le.s32.totalorder 2, %s12
      // Predicated region
      $region37: #{tpu_custom_call.1} parent=5 // pred_check
        %p372 = pneg %p371
      $region38: #{tpu_custom_call.1} parent=5 // pred_check_branch
        %374 = sbr.rel (%p372) target = $region40
      $region39: #{tpu_custom_call.1} parent=5 // pred_region
        %s375 = ssub.s32 %s12, 2
        // Predicated region
        $region41: #{tpu_custom_call.1} parent=39 // pred_check
          %p376 = pneg %p128
        $region42: #{tpu_custom_call.1} parent=39 // pred_check_branch
          %378 = sbr.rel (%p376) target = $region44
        $region43: #{tpu_custom_call.1} parent=39 // pred_region
          %s379 = sand.u32 %s113, 1
          %s380 = scalar_lea.sflag [#allocation3], %s379
          %s381 = sand.u32 %s113, 1
          %s382 = smul.addr %s381, 8
          %s383 = scalar_lea.vmem [#allocation2], %s382
          %384 = dma.done %s380, 128
        $region44: #{tpu_custom_call.1} parent=39 // pred_fallthru
          _
      $region40: #{tpu_custom_call.1} parent=5 // pred_fallthru
        _
    $region6: #{tpu_custom_call.1} parent=1 // loop_footer
      %s16 = sadd.s32 1, %s12
    $region7: #{tpu_custom_call.1} parent=1 // loop_footer_branch
      %11 = sbr.rel target = $region3
    $region8: #{tpu_custom_call.1} parent=1 // loop_exit
      _
    %385 = vsyncpa [#allocation3], 1
    %s386 = scalar_lea.sflag [#allocation3], 1
    %387 = vsyncpa %s386, 1

</llo_original>
